<compile_context>
chip_gen: v7x
topology: tpu7x:2x2x1
jax: 0.10.0
libtpu: 0.0.40
codegen_flags: <defaults>
</compile_context>

<pallas_src>
import functools

import jax
import jax.numpy as jnp
from jax import lax
from jax.experimental import pallas as pl
from jax.experimental.pallas import tpu as pltpu


def actor_kernel(obs_ref, w1_ref, w2_ref, w3_ref, bcat_ref, out_ref,
                 *, hidden_dim, act2, ls_scale, ls_offset):
    # Static prefix slices of the fused bias slab (3, Hmax).
    b1 = bcat_ref[0:1, :hidden_dim]
    b2 = bcat_ref[1:2, :hidden_dim]
    b3 = bcat_ref[2:3, :act2]

    # trunk: Linear -> ReLU -> Linear -> ReLU  (hidden_depth = 2)
    x = obs_ref[...]
    h = jnp.dot(x, w1_ref[...], preferred_element_type=jnp.float32) + b1
    h = jnp.maximum(h, 0.0)
    h = jnp.dot(h, w2_ref[...], preferred_element_type=jnp.float32) + b2
    h = jnp.maximum(h, 0.0)

    # Fused head: one matmul producing [mu | log_std_raw] on the lane axis.
    raw = jnp.dot(h, w3_ref[...], preferred_element_type=jnp.float32) + b3  # [TB, 2A]

    # tanh over the whole slab: first half = tanh(mu) (the SquashedNormal mean),
    # second half = tanh(log_std_raw).
    t = jnp.tanh(raw)

    # log_std = lo + 0.5*(hi-lo)*(tanh(.)+1)  ==  ls_offset + ls_scale*tanh(.)
    std_branch = jnp.exp(ls_offset + ls_scale * t)  # [junk | std]

    a = act2 // 2
    lane = lax.broadcasted_iota(jnp.int32, raw.shape, 1)
    head = jnp.where(lane >= a, std_branch, raw)    # [mu | std]

    # Single fused store: lanes [0:A)=mu, [A:2A)=std, [2A:3A)=tanh(mu), rest junk.
    out_ref[...] = jnp.concatenate([head, t], axis=-1)


def actor_forward(obs, params, log_std_bounds):
    """Returns (mu, std, squashed_mean) — the parameters of SquashedNormal(mu, std)
    and its .mean property. The distribution object itself is host-side glue."""
    (w1, b1, w2, b2, w3, b3) = params
    B, repr_dim = obs.shape
    hidden_dim = w1.shape[1]
    act2 = w3.shape[1]
    A = act2 // 2

    # Fuse the three biases into one (3, Hmax) slab (rows zero-padded to a
    # common lane width) -> one input DMA instead of three.
    Hmax = max(hidden_dim, act2)

    def pad_row(b, d):
        b = b.reshape(1, -1).astype(jnp.float32)
        return jnp.pad(b, ((0, 0), (0, Hmax - d)))

    bcat = jnp.concatenate(
        [pad_row(b1, hidden_dim), pad_row(b2, hidden_dim), pad_row(b3, act2)],
        axis=0)

    lo, hi = log_std_bounds
    ls_scale = 0.5 * (float(hi) - float(lo))
    ls_offset = float(lo) + ls_scale

    kernel = functools.partial(actor_kernel,
                               hidden_dim=hidden_dim, act2=act2,
                               ls_scale=ls_scale, ls_offset=ls_offset)

    # Batch grid axis (parallel) — shards across both TCs on v7x for large B;
    # collapses to grid=(1,) for the small demo batch.
    TB = B if B <= 128 else 128
    grid = (pl.cdiv(B, TB),)

    def resident(shape):
        # Whole array resident in VMEM, same block for every grid step.
        return pl.BlockSpec(shape, lambda i: (0, 0))

    out_w = 2 * act2  # [mu | std | mean | junk]

    slab = pl.pallas_call(
        kernel,
        out_shape=jax.ShapeDtypeStruct((B, out_w), jnp.float32),
        grid=grid,
        in_specs=[
            pl.BlockSpec((TB, repr_dim), lambda i: (i, 0)),   # obs: batch-tiled
            resident(w1.shape),
            resident(w2.shape),
            resident(w3.shape),
            resident(bcat.shape),
        ],
        out_specs=pl.BlockSpec((TB, out_w), lambda i: (i, 0)),
        compiler_params=pltpu.CompilerParams(
            dimension_semantics=("parallel",)),
    )(obs, w1, w2, w3, bcat)

    mu = slab[:, :A]
    std = slab[:, A:act2]
    mean = slab[:, act2:act2 + A]
    return mu, std, mean


def init_params(key, repr_dim, hidden_dim, action_dim):
    """Deterministic parameter init (shapes from mlp(repr_dim, hidden, 2*A, depth=2))."""
    k1, k2, k3 = jax.random.split(key, 3)

    def dense(k, fan_in, fan_out):
        w = jax.random.normal(k, (fan_in, fan_out), jnp.float32) * (1.0 / jnp.sqrt(fan_in))
        b = jnp.zeros((1, fan_out), jnp.float32)
        return w, b

    w1, b1 = dense(k1, repr_dim, hidden_dim)
    w2, b2 = dense(k2, hidden_dim, hidden_dim)
    w3, b3 = dense(k3, hidden_dim, 2 * action_dim)
    return (w1, b1, w2, b2, w3, b3)


def actor_reference(obs, params, log_std_bounds):
    """Pure-JAX reference matching the PyTorch Actor.forward semantics."""
    (w1, b1, w2, b2, w3, b3) = params
    h = jnp.maximum(obs @ w1 + b1.reshape(1, -1), 0.0)
    h = jnp.maximum(h @ w2 + b2.reshape(1, -1), 0.0)
    out = h @ w3 + b3.reshape(1, -1)
    A = out.shape[-1] // 2
    mu, log_std = out[:, :A], out[:, A:]
    log_std = jnp.tanh(log_std)
    lo, hi = log_std_bounds
    log_std = lo + 0.5 * (hi - lo) * (log_std + 1.0)
    std = jnp.exp(log_std)
    return mu, std, jnp.tanh(mu)


if __name__ == "__main__":
    # Small shapes consistent with the Actor module:
    #   repr_dim=32, hidden_dim=32, hidden_depth=2, action_shape=(4,),
    #   log_std_bounds=(-10, 2), batch=8.
    B, repr_dim, hidden_dim, action_dim = 8, 32, 32, 4
    log_std_bounds = (-10.0, 2.0)

    key = jax.random.PRNGKey(0)
    k_obs, k_par = jax.random.split(key)
    obs = jax.random.normal(k_obs, (B, repr_dim), jnp.float32)
    params = init_params(k_par, repr_dim, hidden_dim, action_dim)

    mu, std, mean = actor_forward(obs, params, log_std_bounds)
    jax.block_until_ready((mu, std, mean))

    mu_r, std_r, mean_r = actor_reference(obs, params, log_std_bounds)
    assert jnp.allclose(mu, mu_r, atol=1e-5, rtol=1e-5)
    assert jnp.allclose(std, std_r, atol=1e-5, rtol=1e-5)
    assert jnp.allclose(mean, mean_r, atol=1e-5, rtol=1e-5)

    print("KERNEL_OK")
</pallas_src>

<mosaic_0001>
module attributes {stable_mosaic.version = 11 : i64} {
  func.func @actor_kernel(%arg0: i32, %arg1: memref<8x32xf32, #tpu.memory_space<vmem>>, %arg2: memref<32x32xf32, #tpu.memory_space<vmem>>, %arg3: memref<32x32xf32, #tpu.memory_space<vmem>>, %arg4: memref<32x8xf32, #tpu.memory_space<vmem>>, %arg5: memref<3x32xf32, #tpu.memory_space<vmem>>, %arg6: memref<8x16xf32, #tpu.memory_space<vmem>>) attributes {dimension_semantics = [#tpu.dimension_semantics<parallel>], iteration_bounds = array<i64: 1>, scalar_prefetch = 0 : i64, scratch_operands = 0 : i64, tpu.core_type = #tpu.core_type<tc>, window_params = [{transform_indices = @transform_0, window_bounds = array<i64: 8, 32>}, {pipeline_mode = #tpu.pipeline_mode<synchronous>, transform_indices = @transform_1, window_bounds = array<i64: 32, 32>}, {pipeline_mode = #tpu.pipeline_mode<synchronous>, transform_indices = @transform_2, window_bounds = array<i64: 32, 32>}, {pipeline_mode = #tpu.pipeline_mode<synchronous>, transform_indices = @transform_3, window_bounds = array<i64: 32, 8>}, {pipeline_mode = #tpu.pipeline_mode<synchronous>, transform_indices = @transform_4, window_bounds = array<i64: 3, 32>}, {transform_indices = @transform_5, window_bounds = array<i64: 8, 16>}]} {
    %c0 = arith.constant 0 : index
    %c0_0 = arith.constant 0 : index
    %0 = vector.load %arg5[%c0, %c0_0] : memref<3x32xf32, #tpu.memory_space<vmem>>, vector<1x32xf32>
    %c1 = arith.constant 1 : index
    %c0_1 = arith.constant 0 : index
    %1 = vector.load %arg5[%c1, %c0_1] : memref<3x32xf32, #tpu.memory_space<vmem>>, vector<1x32xf32>
    %c2 = arith.constant 2 : index
    %c0_2 = arith.constant 0 : index
    %2 = vector.load %arg5[%c2, %c0_2] : memref<3x32xf32, #tpu.memory_space<vmem>>, vector<1x8xf32>
    %c0_3 = arith.constant 0 : index
    %c0_4 = arith.constant 0 : index
    %3 = vector.load %arg1[%c0_3, %c0_4] : memref<8x32xf32, #tpu.memory_space<vmem>>, vector<8x32xf32>
    %c0_5 = arith.constant 0 : index
    %c0_6 = arith.constant 0 : index
    %4 = vector.load %arg2[%c0_5, %c0_6] : memref<32x32xf32, #tpu.memory_space<vmem>>, vector<32x32xf32>
    %cst = arith.constant dense<0.000000e+00> : vector<8x32xf32>
    %5 = tpu.matmul %3, %4, %cst {dimension_numbers = #tpu.dot_dimension_numbers<[1], [0], [0], [1], [0, 0, 1, 1], [], []>} : vector<8x32xf32>, vector<32x32xf32>, vector<8x32xf32> -> vector<8x32xf32>
    %6 = vector.broadcast %0 : vector<1x32xf32> to vector<8x32xf32>
    %7 = arith.addf %5, %6 : vector<8x32xf32>
    %cst_7 = arith.constant 0.000000e+00 : f32
    %8 = vector.broadcast %cst_7 : f32 to vector<8x32xf32>
    %9 = arith.maximumf %7, %8 : vector<8x32xf32>
    %c0_8 = arith.constant 0 : index
    %c0_9 = arith.constant 0 : index
    %10 = vector.load %arg3[%c0_8, %c0_9] : memref<32x32xf32, #tpu.memory_space<vmem>>, vector<32x32xf32>
    %cst_10 = arith.constant dense<0.000000e+00> : vector<8x32xf32>
    %11 = tpu.matmul %9, %10, %cst_10 {dimension_numbers = #tpu.dot_dimension_numbers<[1], [0], [0], [1], [0, 0, 1, 1], [], []>} : vector<8x32xf32>, vector<32x32xf32>, vector<8x32xf32> -> vector<8x32xf32>
    %12 = vector.broadcast %1 : vector<1x32xf32> to vector<8x32xf32>
    %13 = arith.addf %11, %12 : vector<8x32xf32>
    %cst_11 = arith.constant 0.000000e+00 : f32
    %14 = vector.broadcast %cst_11 : f32 to vector<8x32xf32>
    %15 = arith.maximumf %13, %14 : vector<8x32xf32>
    %c0_12 = arith.constant 0 : index
    %c0_13 = arith.constant 0 : index
    %16 = vector.load %arg4[%c0_12, %c0_13] : memref<32x8xf32, #tpu.memory_space<vmem>>, vector<32x8xf32>
    %cst_14 = arith.constant dense<0.000000e+00> : vector<8x8xf32>
    %17 = tpu.matmul %15, %16, %cst_14 {dimension_numbers = #tpu.dot_dimension_numbers<[1], [0], [0], [1], [0, 0, 1, 1], [], []>} : vector<8x32xf32>, vector<32x8xf32>, vector<8x8xf32> -> vector<8x8xf32>
    %18 = vector.broadcast %2 : vector<1x8xf32> to vector<8x8xf32>
    %19 = arith.addf %17, %18 : vector<8x8xf32>
    %20 = math.tanh %19 : vector<8x8xf32>
    %cst_15 = arith.constant 6.000000e+00 : f32
    %21 = vector.broadcast %cst_15 : f32 to vector<8x8xf32>
    %22 = arith.mulf %21, %20 : vector<8x8xf32>
    %cst_16 = arith.constant -4.000000e+00 : f32
    %23 = vector.broadcast %cst_16 : f32 to vector<8x8xf32>
    %24 = arith.addf %23, %22 : vector<8x8xf32>
    %25 = math.exp %24 : vector<8x8xf32>
    %26 = tpu.iota {dimensions = array<i32: 1>} : vector<8x8xi32>
    %c4_i32 = arith.constant 4 : i32
    %27 = vector.broadcast %c4_i32 : i32 to vector<8x8xi32>
    %28 = arith.cmpi sge, %26, %27 : vector<8x8xi32>
    %29 = arith.select %28, %25, %19 : vector<8x8xi1>, vector<8x8xf32>
    %30 = tpu.concatenate %29, %20 in 1 : vector<8x8xf32>, vector<8x8xf32> -> vector<8x16xf32>
    %c0_17 = arith.constant 0 : index
    %c0_18 = arith.constant 0 : index
    %31 = vector.load %arg6[%c0_17, %c0_18] : memref<8x16xf32, #tpu.memory_space<vmem>>, vector<8x16xf32>
    tpu.vector_store %arg6[%c0_17, %c0_18], %30 {strides = array<i32>} : memref<8x16xf32, #tpu.memory_space<vmem>>, vector<8x16xf32>,
    return
  }
  func.func @transform_0(%arg0: i32) -> (i32, i32) {
    %c0_i32 = arith.constant 0 : i32
    %c0_i32_0 = arith.constant 0 : i32
    return %arg0, %c0_i32 : i32, i32
  }
  func.func @transform_1(%arg0: i32) -> (i32, i32) {
    %c0_i32 = arith.constant 0 : i32
    %c0_i32_0 = arith.constant 0 : i32
    %c0_i32_1 = arith.constant 0 : i32
    return %c0_i32, %c0_i32_0 : i32, i32
  }
  func.func @transform_2(%arg0: i32) -> (i32, i32) {
    %c0_i32 = arith.constant 0 : i32
    %c0_i32_0 = arith.constant 0 : i32
    %c0_i32_1 = arith.constant 0 : i32
    return %c0_i32, %c0_i32_0 : i32, i32
  }
  func.func @transform_3(%arg0: i32) -> (i32, i32) {
    %c0_i32 = arith.constant 0 : i32
    %c0_i32_0 = arith.constant 0 : i32
    %c0_i32_1 = arith.constant 0 : i32
    return %c0_i32, %c0_i32_0 : i32, i32
  }
  func.func @transform_4(%arg0: i32) -> (i32, i32) {
    %c0_i32 = arith.constant 0 : i32
    %c0_i32_0 = arith.constant 0 : i32
    %c0_i32_1 = arith.constant 0 : i32
    return %c0_i32, %c0_i32_0 : i32, i32
  }
  func.func @transform_5(%arg0: i32) -> (i32, i32) {
    %c0_i32 = arith.constant 0 : i32
    %c0_i32_0 = arith.constant 0 : i32
    return %arg0, %c0_i32 : i32, i32
  }
}

</mosaic_0001>

<llo_original>
// kernel: tpu_custom_call.1
$region0: #{tpu_custom_call.1}
  #allocation0 [shape = 'u32[]', space=smem, size = 0x4, offset = 0x4, fixed_abs, tag = 'smem constant byte address 0x4 - core index']
  #allocation1 [shape = 'u32[144,128]{1,0:T(1,128)}', space=vmem, size = 0x12000, scoped, tag = 'internal scratch']
  %s0 = inlined_call_operand.vmem [shape: f32[8,32], index: 0, kind: input, shape index: {}]
  %s1 = inlined_call_operand.vmem [shape: f32[32,32], index: 1, kind: input, shape index: {}]
  %s2 = inlined_call_operand.hbm [shape: f32[32,32], index: 2, kind: input, shape index: {}]
  %s3 = inlined_call_operand.vmem [shape: f32[32,8], index: 3, kind: input, shape index: {}]
  %s4 = inlined_call_operand.vmem [shape: f32[3,32], index: 4, kind: input, shape index: {}]
  %s5 = inlined_call_operand.hbm [shape: f32[8,16], index: 5, kind: output, shape index: {}]
  %s6 = sld [smem:[#allocation0]]
  $region34: #{tpu_custom_call.1} parent=0
    _
  %s8 = ssub.s32 1, %s6
  %s9 = scalar_select 0, %s8, %s6
  $region1: #{tpu_custom_call.1} parent=0
    #allocation2 [shape = 'u8[16384]{0}', space=vmem, size = 0x4000, scoped, tag = 'input window, operand 2, single buffered']
    #allocation3 [shape = 's32[1]{0}', space=sflag, size = 0x4, scoped, tag = 'scoped memory for tpu_custom_call.1']
    #allocation4 [shape = 's32[1]{0}', space=sflag, size = 0x4, scoped, tag = 'scoped memory for tpu_custom_call.1']
    #allocation5 [shape = 'u8[4096]{0}', space=vmem, size = 0x1000, scoped, tag = 'output window, operand 0, single buffered']
    %10 = vsyncpa [#allocation3], 0
    %11 = vsyncpa [#allocation4], 0
    // Predicated region
    $region2: #{tpu_custom_call.1} parent=1 // pred_check
      _
    $region3: #{tpu_custom_call.1} parent=1 // pred_check_branch
      %13 = sbr.rel (0) target = $region5
    $region4: #{tpu_custom_call.1} parent=1 // pred_region
      _
    $region5: #{tpu_custom_call.1} parent=1 // pred_fallthru
      _
    // Predicated region
    $region6: #{tpu_custom_call.1} parent=1 // pred_check
      _
    $region7: #{tpu_custom_call.1} parent=1 // pred_check_branch
      %15 = sbr.rel (0) target = $region9
    $region8: #{tpu_custom_call.1} parent=1 // pred_region
      _
    $region9: #{tpu_custom_call.1} parent=1 // pred_fallthru
      _
    // Predicated region
    $region10: #{tpu_custom_call.1} parent=1 // pred_check
      _
    $region11: #{tpu_custom_call.1} parent=1 // pred_check_branch
      %17 = sbr.rel (0) target = $region13
    $region12: #{tpu_custom_call.1} parent=1 // pred_region
      %s19 = ssub.s32 512, 512
      %20 = vsyncadd [#allocation3], %s19
      %s21 = sshll.u32 [#allocation2], 4
      %s22 = int_to_ptr.vmem [resolvable:$true] %s21
      %27 = dma.hbm_to_vmem [thread:$0]  %s2, 512, %s22, [#allocation3], 128, 128, 8
    $region13: #{tpu_custom_call.1} parent=1 // pred_fallthru
      _
    // Predicated region
    $region14: #{tpu_custom_call.1} parent=1 // pred_check
      _
    $region15: #{tpu_custom_call.1} parent=1 // pred_check_branch
      %29 = sbr.rel (0) target = $region17
    $region16: #{tpu_custom_call.1} parent=1 // pred_region
      _
    $region17: #{tpu_custom_call.1} parent=1 // pred_fallthru
      _
    // Predicated region
    $region18: #{tpu_custom_call.1} parent=1 // pred_check
      _
    $region19: #{tpu_custom_call.1} parent=1 // pred_check_branch
      %31 = sbr.rel (0) target = $region21
    $region20: #{tpu_custom_call.1} parent=1 // pred_region
      _
    $region21: #{tpu_custom_call.1} parent=1 // pred_fallthru
      _
    // Predicated region
    $region22: #{tpu_custom_call.1} parent=1 // pred_check
      _
    $region23: #{tpu_custom_call.1} parent=1 // pred_check_branch
      %33 = sbr.rel (0) target = $region25
    $region24: #{tpu_custom_call.1} parent=1 // pred_region
      %34 = dma.done [#allocation3], 512
    $region25: #{tpu_custom_call.1} parent=1 // pred_fallthru
      _
    %v35 = vld [vmem:[%s4] sm:$0x1]
    %v36 = vld [vmem:[%s4 + $0x1] sm:$0x1]
    %v37 = vld [vmem:[%s4 + $0x2] sm:$0x1]
    %v38 = vld [vmem:[%s0] sm:$0xff]
    %v39 = vld [vmem:[%s1] sm:$0xff]
    %v40 = vld [vmem:[%s1 + $0x8] sm:$0xff]
    %v41 = vld [vmem:[%s1 + $0x10] sm:$0xff]
    %v42 = vld [vmem:[%s1 + $0x18] sm:$0xff]
    %v43 = vlaneseq
    %v44 = vshrl.u32 %v43, 7
    %v45 = vsub.s32 0, %v44
    %v46 = vrot.slane %v35, %v45
    %vm47 = vcmask 261120
    %v49 = vsel %vm47, %v38, 0
    %51 = vmatprep.subr.mxu0 0.0
    %52 = vmatpush1.msra.mxu0 %v39
    %53 = vmatprep.subr.mxu0 0.0
    %54 = vmatpush1.msra.mxu0 %v40
    %55 = vmatprep.subr.mxu0 0.0
    %56 = vmatpush1.msra.mxu0 %v41
    %57 = vmatprep.subr.mxu0 0.0
    %58 = vmatpush1.msra.mxu0 %v42
    %59 = vmatprep.subr.mxu0 0.0
    %60 = vmatpush1.msra.mxu0 0.0
    %61 = vmatprep.subr.mxu0 0.0
    %62 = vmatpush1.msra.mxu0 0.0
    %63 = vmatprep.subr.mxu0 0.0
    %64 = vmatpush1.msra.mxu0 0.0
    %65 = vmatprep.subr.mxu0 0.0
    %66 = vmatpush1.msra.mxu0 0.0
    %67 = vmatprep.subr.mxu0 0.0
    %68 = vmatpush1.msra.mxu0 0.0
    %69 = vmatprep.subr.mxu0 0.0
    %70 = vmatpush1.msra.mxu0 0.0
    %71 = vmatprep.subr.mxu0 0.0
    %72 = vmatpush1.msra.mxu0 0.0
    %73 = vmatprep.subr.mxu0 0.0
    %74 = vmatpush1.msra.mxu0 0.0
    %75 = vmatprep.subr.mxu0 0.0
    %76 = vmatpush1.msra.mxu0 0.0
    %77 = vmatprep.subr.mxu0 0.0
    %78 = vmatpush1.msra.mxu0 0.0
    %79 = vmatprep.subr.mxu0 0.0
    %80 = vmatpush1.msra.mxu0 0.0
    %81 = vmatprep.subr.mxu0 0.0
    %82 = vmatpush1.msra.mxu0 0.0
    %83 = vmatprep.subr.mxu0 0.0
    %84 = vmatpush1.msra.mxu0 0.0
    %85 = vmatprep.subr.mxu0 0.0
    %86 = vmatpush1.msra.mxu0 0.0
    %87 = vmatprep.subr.mxu0 0.0
    %88 = vmatpush1.msra.mxu0 0.0
    %89 = vmatprep.subr.mxu0 0.0
    %90 = vmatpush1.msra.mxu0 0.0
    %91 = vmatprep.subr.mxu0 0.0
    %92 = vmatpush1.msra.mxu0 0.0
    %93 = vmatprep.subr.mxu0 0.0
    %94 = vmatpush1.msra.mxu0 0.0
    %95 = vmatprep.subr.mxu0 0.0
    %96 = vmatpush1.msra.mxu0 0.0
    %97 = vmatprep.subr.mxu0 0.0
    %98 = vmatpush1.msra.mxu0 0.0
    %99 = vmatprep.subr.mxu0 0.0
    %100 = vmatpush1.msra.mxu0 0.0
    %101 = vmatprep.subr.mxu0 0.0
    %102 = vmatpush1.msra.mxu0 0.0
    %103 = vmatprep.subr.mxu0 0.0
    %104 = vmatpush1.msra.mxu0 0.0
    %105 = vmatprep.subr.mxu0 0.0
    %106 = vmatpush1.msra.mxu0 0.0
    %107 = vmatprep.subr.mxu0 0.0
    %108 = vmatpush1.msra.mxu0 0.0
    %109 = vmatprep.subr.mxu0 0.0
    %110 = vmatpush1.msra.mxu0 0.0
    %111 = vmatprep.subr.mxu0 0.0
    %112 = vmatpush1.msra.mxu0 0.0
    %113 = vmatprep.subr.mxu0 0.0
    %114 = vmatpush1.msra.mxu0 0.0
    %115 = vmatprep.mubr.f32.mxu0 0.0
    %116 = vmatmul.mubr.f32.gmra.mrb[0].mxu0 %v49
    %v117 = vpop.f32.mrb[0].mxu0
    %v118 = vadd.f32 %v46, %v117
    %v119 = vpop.f32.mrb[0].mxu0
    %120 = vdwg.mxu0
    %v121 = vmax.f32 %v118, 0.0
    %v122 = vld [vmem:[#allocation2] sm:$0xff]
    %v123 = vld [vmem:[#allocation2 + $0x8] sm:$0xff]
    %v124 = vld [vmem:[#allocation2 + $0x10] sm:$0xff]
    %v125 = vld [vmem:[#allocation2 + $0x18] sm:$0xff]
    %v126 = vlaneseq
    %v127 = vshrl.u32 %v126, 7
    %v128 = vsub.s32 0, %v127
    %v129 = vrot.slane %v36, %v128
    %v131 = vsel %vm47, %v121, 0
    %133 = vmatprep.subr.mxu0 0.0
    %134 = vmatpush1.msra.mxu0 %v122
    %135 = vmatprep.subr.mxu0 0.0
    %136 = vmatpush1.msra.mxu0 %v123
    %137 = vmatprep.subr.mxu0 0.0
    %138 = vmatpush1.msra.mxu0 %v124
    %139 = vmatprep.subr.mxu0 0.0
    %140 = vmatpush1.msra.mxu0 %v125
    %141 = vmatprep.subr.mxu0 0.0
    %142 = vmatpush1.msra.mxu0 0.0
    %143 = vmatprep.subr.mxu0 0.0
    %144 = vmatpush1.msra.mxu0 0.0
    %145 = vmatprep.subr.mxu0 0.0
    %146 = vmatpush1.msra.mxu0 0.0
    %147 = vmatprep.subr.mxu0 0.0
    %148 = vmatpush1.msra.mxu0 0.0
    %149 = vmatprep.subr.mxu0 0.0
    %150 = vmatpush1.msra.mxu0 0.0
    %151 = vmatprep.subr.mxu0 0.0
    %152 = vmatpush1.msra.mxu0 0.0
    %153 = vmatprep.subr.mxu0 0.0
    %154 = vmatpush1.msra.mxu0 0.0
    %155 = vmatprep.subr.mxu0 0.0
    %156 = vmatpush1.msra.mxu0 0.0
    %157 = vmatprep.subr.mxu0 0.0
    %158 = vmatpush1.msra.mxu0 0.0
    %159 = vmatprep.subr.mxu0 0.0
    %160 = vmatpush1.msra.mxu0 0.0
    %161 = vmatprep.subr.mxu0 0.0
    %162 = vmatpush1.msra.mxu0 0.0
    %163 = vmatprep.subr.mxu0 0.0
    %164 = vmatpush1.msra.mxu0 0.0
    %165 = vmatprep.subr.mxu0 0.0
    %166 = vmatpush1.msra.mxu0 0.0
    %167 = vmatprep.subr.mxu0 0.0
    %168 = vmatpush1.msra.mxu0 0.0
    %169 = vmatprep.subr.mxu0 0.0
    %170 = vmatpush1.msra.mxu0 0.0
    %171 = vmatprep.subr.mxu0 0.0
    %172 = vmatpush1.msra.mxu0 0.0
    %173 = vmatprep.subr.mxu0 0.0
    %174 = vmatpush1.msra.mxu0 0.0
    %175 = vmatprep.subr.mxu0 0.0
    %176 = vmatpush1.msra.mxu0 0.0
    %177 = vmatprep.subr.mxu0 0.0
    %178 = vmatpush1.msra.mxu0 0.0
    %179 = vmatprep.subr.mxu0 0.0
    %180 = vmatpush1.msra.mxu0 0.0
    %181 = vmatprep.subr.mxu0 0.0
    %182 = vmatpush1.msra.mxu0 0.0
    %183 = vmatprep.subr.mxu0 0.0
    %184 = vmatpush1.msra.mxu0 0.0
    %185 = vmatprep.subr.mxu0 0.0
    %186 = vmatpush1.msra.mxu0 0.0
    %187 = vmatprep.subr.mxu0 0.0
    %188 = vmatpush1.msra.mxu0 0.0
    %189 = vmatprep.subr.mxu0 0.0
    %190 = vmatpush1.msra.mxu0 0.0
    %191 = vmatprep.subr.mxu0 0.0
    %192 = vmatpush1.msra.mxu0 0.0
    %193 = vmatprep.subr.mxu0 0.0
    %194 = vmatpush1.msra.mxu0 0.0
    %195 = vmatprep.subr.mxu0 0.0
    %196 = vmatpush1.msra.mxu0 0.0
    %197 = vmatprep.mubr.f32.mxu0 0.0
    %198 = vmatmul.mubr.f32.gmra.mrb[0].mxu0 %v131
    %v199 = vpop.f32.mrb[0].mxu0
    %v200 = vadd.f32 %v129, %v199
    %v201 = vpop.f32.mrb[0].mxu0
    %202 = vdwg.mxu0
    %v203 = vmax.f32 %v200, 0.0
    %v204 = vld [vmem:[%s3] sm:$0xff]
    %v205 = vld [vmem:[%s3 + $0x8] sm:$0xff]
    %v206 = vld [vmem:[%s3 + $0x10] sm:$0xff]
    %v207 = vld [vmem:[%s3 + $0x18] sm:$0xff]
    %v208 = vlaneseq
    %v209 = vshrl.u32 %v208, 7
    %v210 = vsub.s32 0, %v209
    %v211 = vrot.slane %v37, %v210
    %v213 = vsel %vm47, %v203, 0
    %215 = vmatprep.subr.mxu0 0.0
    %216 = vmatpush1.msra.mxu0 %v204
    %217 = vmatprep.subr.mxu0 0.0
    %218 = vmatpush1.msra.mxu0 %v205
    %219 = vmatprep.subr.mxu0 0.0
    %220 = vmatpush1.msra.mxu0 %v206
    %221 = vmatprep.subr.mxu0 0.0
    %222 = vmatpush1.msra.mxu0 %v207
    %223 = vmatprep.subr.mxu0 0.0
    %224 = vmatpush1.msra.mxu0 0.0
    %225 = vmatprep.subr.mxu0 0.0
    %226 = vmatpush1.msra.mxu0 0.0
    %227 = vmatprep.subr.mxu0 0.0
    %228 = vmatpush1.msra.mxu0 0.0
    %229 = vmatprep.subr.mxu0 0.0
    %230 = vmatpush1.msra.mxu0 0.0
    %231 = vmatprep.subr.mxu0 0.0
    %232 = vmatpush1.msra.mxu0 0.0
    %233 = vmatprep.subr.mxu0 0.0
    %234 = vmatpush1.msra.mxu0 0.0
    %235 = vmatprep.subr.mxu0 0.0
    %236 = vmatpush1.msra.mxu0 0.0
    %237 = vmatprep.subr.mxu0 0.0
    %238 = vmatpush1.msra.mxu0 0.0
    %239 = vmatprep.subr.mxu0 0.0
    %240 = vmatpush1.msra.mxu0 0.0
    %241 = vmatprep.subr.mxu0 0.0
    %242 = vmatpush1.msra.mxu0 0.0
    %243 = vmatprep.subr.mxu0 0.0
    %244 = vmatpush1.msra.mxu0 0.0
    %245 = vmatprep.subr.mxu0 0.0
    %246 = vmatpush1.msra.mxu0 0.0
    %247 = vmatprep.subr.mxu0 0.0
    %248 = vmatpush1.msra.mxu0 0.0
    %249 = vmatprep.subr.mxu0 0.0
    %250 = vmatpush1.msra.mxu0 0.0
    %251 = vmatprep.subr.mxu0 0.0
    %252 = vmatpush1.msra.mxu0 0.0
    %253 = vmatprep.subr.mxu0 0.0
    %254 = vmatpush1.msra.mxu0 0.0
    %255 = vmatprep.subr.mxu0 0.0
    %256 = vmatpush1.msra.mxu0 0.0
    %257 = vmatprep.subr.mxu0 0.0
    %258 = vmatpush1.msra.mxu0 0.0
    %259 = vmatprep.subr.mxu0 0.0
    %260 = vmatpush1.msra.mxu0 0.0
    %261 = vmatprep.subr.mxu0 0.0
    %262 = vmatpush1.msra.mxu0 0.0
    %263 = vmatprep.subr.mxu0 0.0
    %264 = vmatpush1.msra.mxu0 0.0
    %265 = vmatprep.subr.mxu0 0.0
    %266 = vmatpush1.msra.mxu0 0.0
    %267 = vmatprep.subr.mxu0 0.0
    %268 = vmatpush1.msra.mxu0 0.0
    %269 = vmatprep.subr.mxu0 0.0
    %270 = vmatpush1.msra.mxu0 0.0
    %271 = vmatprep.subr.mxu0 0.0
    %272 = vmatpush1.msra.mxu0 0.0
    %273 = vmatprep.subr.mxu0 0.0
    %274 = vmatpush1.msra.mxu0 0.0
    %275 = vmatprep.subr.mxu0 0.0
    %276 = vmatpush1.msra.mxu0 0.0
    %277 = vmatprep.subr.mxu0 0.0
    %278 = vmatpush1.msra.mxu0 0.0
    %279 = vmatprep.mubr.f32.mxu0 0.0
    %280 = vmatmul.mubr.f32.gmra.mrb[0].mxu0 %v213
    %v281 = vpop.f32.mrb[0].mxu0
    %v282 = vadd.f32 %v211, %v281
    %v283 = vpop.f32.mrb[0].mxu0
    %284 = vdwg.mxu0
    %v285 = vtanh.pop %v282
    %v286 = vmul.f32 %v285, 6.0
    %v287 = vadd.f32 %v286, -4.0
    %v288 = vmul.f32 %v287, 1.442695
    %v289 = vpow.pop %v288
    %v290 = vlaneseq
    %v291 = vand.u32 %v290, 127
    %vm292 = vcmp.ge.s32.totalorder %v291, 4
    %v293 = vsel %vm292, %v289, %v282
    %295 = vrot.lane.b32.xlu0 %v285, 8
    %v296 = vpop.permute.xlu0 %295
    %vm298 = vcmask 64512
    %v299 = vsel %vm298, %v293, %v296
    %vm300 = vcmask 130048
    %301 = vst.msk [vmem:[#allocation5] sm:$0xff] %vm300, %v299
    // Predicated region
    $region26: #{tpu_custom_call.1} parent=1 // pred_check
      _
    $region27: #{tpu_custom_call.1} parent=1 // pred_check_branch
      %303 = sbr.rel (0) target = $region29
    $region28: #{tpu_custom_call.1} parent=1 // pred_region
      %s305 = ssub.s32 128, 128
      %306 = vsyncadd [#allocation4], %s305
      %s308 = sshll.u32 [#allocation5], 4
      %s309 = int_to_ptr.vmem [resolvable:$true] %s308
      %311 = dma.vmem_to_hbm [thread:$0]  %s309, 128, %s5, [#allocation4]
    $region29: #{tpu_custom_call.1} parent=1 // pred_fallthru
      _
    // Predicated region
    $region30: #{tpu_custom_call.1} parent=1 // pred_check
      _
    $region31: #{tpu_custom_call.1} parent=1 // pred_check_branch
      %313 = sbr.rel (0) target = $region33
    $region32: #{tpu_custom_call.1} parent=1 // pred_region
      %314 = dma.done [#allocation4], 128
    $region33: #{tpu_custom_call.1} parent=1 // pred_fallthru
      _
    %315 = vsyncpa [#allocation3], 1
    %316 = vsyncpa [#allocation4], 1

</llo_original>
